<compile_context>
chip_gen: v5e
topology: v5e:2x2
jax: 0.10.0
libtpu: 0.0.40
codegen_flags: <defaults>
</compile_context>

<pallas_src>
import jax
import jax.numpy as jnp
from jax.experimental import pallas as pl
from jax.experimental.pallas import tpu as pltpu

LN_EPS = 1e-5

# Row layout of the packed (8, Dp) grid-invariant parameter block.
_ROW_BIAS, _ROW_GAMMA, _ROW_BETA, _ROW_MASK = 0, 1, 2, 3


def _round_up(x, m):
    return (x + m - 1) // m * m


def _cdiv(a, b):
    return (a + b - 1) // b


def _vmem_budget_bytes():
    """~75% of this generation's physical VMEM (96 MiB v5e/v6e, 48 MiB v7x)."""
    try:
        phys = int(pltpu.get_tpu_info().vmem_capacity_bytes)
    except Exception:
        phys = 64 * 1024 * 1024   # unknown -> assume smallest (v7x-like)
    return max(32 * 1024 * 1024, phys * 3 // 4)


def _epilogue(y, p_ref, o_ref, *, d_out, d_pad):
    """LayerNorm (statistics over the real d_out) -> ReLU -> store.  y: f32."""
    inv_n = 1.0 / d_out
    y = y + p_ref[_ROW_BIAS:_ROW_BIAS + 1, :]        # bias (padded cols stay 0)
    mean = jnp.sum(y, axis=-1, keepdims=True) * inv_n
    cent = y - mean
    if d_pad != d_out:
        # One multiply by the precomputed {1,0} column mask (bit-compatible with
        # iota+where); keeps the padded lanes out of the variance.
        cent = cent * p_ref[_ROW_MASK:_ROW_MASK + 1, :]
    var = jnp.sum(cent * cent, axis=-1, keepdims=True) * inv_n
    y_norm = cent * jax.lax.rsqrt(var + LN_EPS)
    y_norm = (y_norm * p_ref[_ROW_GAMMA:_ROW_GAMMA + 1, :]
              + p_ref[_ROW_BETA:_ROW_BETA + 1, :])
    # Activation("relu"); Dropout is the identity at inference.
    # TODO(synk): training-mode dropout (random mask + 1/(1-p) scaling) not implemented.
    o_ref[...] = jnp.maximum(y_norm, 0.0).astype(o_ref.dtype)


def _make_single_kernel(d_out, d_pad):
    """Whole reduction (D_in) resident: one MXU matmul + epilogue per batch tile."""
    def kernel(x_ref, w_ref, p_ref, o_ref):
        y = jnp.dot(x_ref[...], w_ref[...], preferred_element_type=jnp.float32)
        _epilogue(y, p_ref, o_ref, d_out=d_out, d_pad=d_pad)
    return kernel


def _make_ktiled_kernel(d_out, d_pad):
    """K-reduction grid axis with a resident f32 accumulator; epilogue at k==last."""
    def kernel(x_ref, w_ref, p_ref, o_ref, acc_ref):
        k = pl.program_id(1)

        @pl.when(k == 0)
        def _():
            acc_ref[...] = jnp.zeros_like(acc_ref)

        acc_ref[...] += jnp.dot(x_ref[...], w_ref[...],
                                preferred_element_type=jnp.float32)

        @pl.when(k == pl.num_programs(1) - 1)
        def _():
            _epilogue(acc_ref[...], p_ref, o_ref, d_out=d_out, d_pad=d_pad)
    return kernel


def prepare_mlp_params(w, b, gamma, beta):
    """Pad/pack parameters ONCE at init time.

    Returns (w_padded [D_in, Dp], params [8, Dp] f32, d_out).  Hoisting the
    padding here avoids a weight-sized HBM read+write on every forward call.
    params rows: 0=bias, 1=gamma, 2=beta, 3=variance mask (1.0 real / 0.0 pad).
    """
    d_in, d_out = w.shape
    d_pad = _round_up(d_out, 128)   # lane-dense output width -> unmasked stores
    if d_pad != d_out:
        w = jnp.pad(w, ((0, 0), (0, d_pad - d_out)))
    params = jnp.zeros((8, d_pad), jnp.float32)
    params = params.at[_ROW_BIAS, :d_out].set(b.astype(jnp.float32))
    params = params.at[_ROW_GAMMA, :d_out].set(gamma.astype(jnp.float32))
    params = params.at[_ROW_BETA, :d_out].set(beta.astype(jnp.float32))
    params = params.at[_ROW_MASK, :d_out].set(1.0)
    return w, params, d_out


def mlp_block(x, w_padded, params, d_out, *, tm=256, out_dtype=None, k_tile=None):
    """y = ReLU(LayerNorm(x @ W + b)); Dropout = identity (inference).

    x: [B, D_in]; w_padded: [D_in, Dp]; params: [8, Dp] (from prepare_mlp_params).
    Returns [B, d_out] in out_dtype (default: x.dtype, e.g. bf16 -> bf16).
    """
    B, D_in = x.shape
    Dp = w_padded.shape[1]
    assert w_padded.shape[0] == D_in and Dp % 128 == 0 and Dp >= d_out
    assert params.shape == (8, Dp)
    out_dtype = jnp.dtype(out_dtype if out_dtype is not None else x.dtype)

    x_isz = jnp.dtype(x.dtype).itemsize
    w_isz = jnp.dtype(w_padded.dtype).itemsize
    out_isz = out_dtype.itemsize

    # Batch tile: sublane-aligned, MXU-friendly, and clamped so the grid has at
    # least 2 steps when the batch allows it (both v7x TensorCores stay busy).
    pack = {4: 8, 2: 16, 1: 32}[x_isz]
    tm = max(pack, min(_round_up(tm, pack), _round_up(B, pack)))
    if B >= 2 * pack:
        tm = max(pack, min(tm, _round_up(_cdiv(B, 2), pack)))
    Bp = _round_up(B, tm)
    if Bp != B:
        x = jnp.pad(x, ((0, Bp - B), (0, 0)))

    budget = _vmem_budget_bytes()

    # Honest footprint of the "weight fully resident" path: double-buffered x /
    # out tiles, single-buffered weight + params, plus live f32 epilogue slabs.
    est_single = (2 * tm * D_in * x_isz + D_in * Dp * w_isz + 8 * Dp * 4
                  + 2 * tm * Dp * out_isz + 3 * tm * Dp * 4)
    use_ktiles = (k_tile is not None) or (est_single > budget)

    if use_ktiles:
        def est_k(t):
            return (2 * tm * t * x_isz + 2 * t * Dp * w_isz + 8 * Dp * 4
                    + tm * Dp * 4 + 2 * tm * Dp * out_isz + 3 * tm * Dp * 4)
        if k_tile is not None:
            tk = max(128, _round_up(int(k_tile), 128))
        else:
            tk = 512
            while tk > 128 and est_k(tk) > budget:
                tk //= 2
            if est_k(tk) > budget:
                raise ValueError(
                    "MLPBlock kernel does not fit in VMEM even with tk=128; "
                    "reduce tm (tm=%d, Dp=%d, budget=%d B)." % (tm, Dp, budget))
        tk = min(tk, _round_up(D_in, 128))
        Dk = _round_up(_round_up(D_in, 128), tk)
        nk = Dk // tk
        if Dk != D_in:   # zero-pad the reduction axis (contributes 0 to the dot)
            x = jnp.pad(x, ((0, 0), (0, Dk - D_in)))
            w_padded = jnp.pad(w_padded, ((0, Dk - D_in), (0, 0)))
    else:
        tk, Dk, nk = D_in, D_in, 1

    vmem_limit = int(budget)

    def _build_and_run(single_buffer_params):
        # index_map == (0,0) every step -> single-buffer those blocks to halve
        # their VMEM footprint (double-buffering buys zero overlap for them).
        inv_kw = dict(pipeline_mode=pl.Buffered(1)) if single_buffer_params else {}
        if not use_ktiles:
            grid = (Bp // tm,)
            in_specs = [
                pl.BlockSpec((tm, D_in), lambda i: (i, 0)),
                pl.BlockSpec((D_in, Dp), lambda i: (0, 0), **inv_kw),
                pl.BlockSpec((8, Dp), lambda i: (0, 0), **inv_kw),
            ]
            out_specs = pl.BlockSpec((tm, Dp), lambda i: (i, 0))
            scratch = []
            kernel = _make_single_kernel(d_out, Dp)
            semantics = ("parallel",)
            w_passes = 1
        else:
            grid = (Bp // tm, nk)
            in_specs = [
                pl.BlockSpec((tm, tk), lambda i, k: (i, k)),
                pl.BlockSpec((tk, Dp), lambda i, k: (k, 0)),
                pl.BlockSpec((8, Dp), lambda i, k: (0, 0), **inv_kw),
            ]
            out_specs = pl.BlockSpec((tm, Dp), lambda i, k: (i, 0))
            scratch = [pltpu.VMEM((tm, Dp), jnp.float32)]
            kernel = _make_ktiled_kernel(d_out, Dp)
            semantics = ("parallel", "arbitrary")
            w_passes = Bp // tm

        cost = pl.CostEstimate(
            flops=2 * Bp * Dk * Dp,
            transcendentals=0,
            bytes_accessed=(Bp * Dk * x_isz + w_passes * Dk * Dp * w_isz
                            + 8 * Dp * 4 + Bp * Dp * out_isz))

        return pl.pallas_call(
            kernel,
            out_shape=jax.ShapeDtypeStruct((Bp, Dp), out_dtype),
            grid_spec=pltpu.PrefetchScalarGridSpec(
                num_scalar_prefetch=0,
                grid=grid,
                in_specs=in_specs,
                out_specs=out_specs,
                scratch_shapes=scratch),
            compiler_params=pltpu.CompilerParams(
                dimension_semantics=semantics,
                vmem_limit_bytes=vmem_limit),
            cost_estimate=cost,
        )(x, w_padded, params)

    try:
        out = _build_and_run(True)     # single-buffer the grid-invariant blocks
    except Exception:
        # Fallback if this jax build rejects pl.Buffered(1): double-buffer them.
        out = _build_and_run(False)

    return out[:B, :d_out]


def mlp_block_ref(x, w, b, gamma, beta):
    y = x.astype(jnp.float32) @ w.astype(jnp.float32) + b
    mean = jnp.mean(y, axis=-1, keepdims=True)
    var = jnp.mean((y - mean) ** 2, axis=-1, keepdims=True)
    y = (y - mean) / jnp.sqrt(var + LN_EPS)
    y = y * gamma + beta
    return jnp.maximum(y, 0.0)


if __name__ == "__main__":
    key = jax.random.PRNGKey(0)

    # --- Test 1: resident-weight path; D_out=48 exercises lane padding to 128.
    B, D_in, D_out = 64, 32, 48
    kx, kw, kb, kg, kbe = jax.random.split(key, 5)
    x = jax.random.normal(kx, (B, D_in), dtype=jnp.float32).astype(jnp.bfloat16)
    w = (jax.random.normal(kw, (D_in, D_out), dtype=jnp.float32)
         * (1.0 / jnp.sqrt(D_in))).astype(jnp.bfloat16)
    b = jax.random.normal(kb, (D_out,), dtype=jnp.float32) * 0.01
    gamma = jnp.ones((D_out,), jnp.float32) + 0.1 * jax.random.normal(kg, (D_out,))
    beta = 0.1 * jax.random.normal(kbe, (D_out,), dtype=jnp.float32)

    w_p, params, d_out = prepare_mlp_params(w, b, gamma, beta)   # once, at init
    out = jax.block_until_ready(mlp_block(x, w_p, params, d_out))
    ref = mlp_block_ref(x, w, b, gamma, beta)
    assert out.shape == (B, D_out) and out.dtype == x.dtype
    tol = 2e-2 if out.dtype == jnp.bfloat16 else 2e-3   # dtype-aware tolerance
    assert jnp.allclose(out.astype(jnp.float32), ref, atol=tol, rtol=tol), \
        "test1 mismatch vs reference"

    # --- Test 2: K-tiled reduction path (2 K-steps), f32 output.
    B2, D_in2, D_out2 = 48, 256, 128
    kx2, kw2, kb2, kg2, kbe2 = jax.random.split(jax.random.PRNGKey(1), 5)
    x2 = jax.random.normal(kx2, (B2, D_in2), dtype=jnp.float32).astype(jnp.bfloat16)
    w2 = (jax.random.normal(kw2, (D_in2, D_out2), dtype=jnp.float32)
          * (1.0 / jnp.sqrt(D_in2))).astype(jnp.bfloat16)
    b2 = jax.random.normal(kb2, (D_out2,), dtype=jnp.float32) * 0.01
    gamma2 = jnp.ones((D_out2,), jnp.float32) + 0.1 * jax.random.normal(kg2, (D_out2,))
    beta2 = 0.1 * jax.random.normal(kbe2, (D_out2,), dtype=jnp.float32)

    w2_p, params2, d_out2 = prepare_mlp_params(w2, b2, gamma2, beta2)
    out2 = jax.block_until_ready(
        mlp_block(x2, w2_p, params2, d_out2, k_tile=128, out_dtype=jnp.float32))
    ref2 = mlp_block_ref(x2, w2, b2, gamma2, beta2)
    assert out2.shape == (B2, D_out2) and out2.dtype == jnp.float32
    assert jnp.allclose(out2, ref2, atol=2e-3, rtol=2e-3), "test2 mismatch vs reference"

    print("KERNEL_OK")
</pallas_src>

<mosaic_0001>
module attributes {stable_mosaic.version = 11 : i64} {
  func.func @kernel(%arg0: i32, %arg1: memref<32x32xbf16, #tpu.memory_space<vmem>>, %arg2: memref<32x128xbf16, #tpu.memory_space<vmem>>, %arg3: memref<8x128xf32, #tpu.memory_space<vmem>>, %arg4: memref<32x128xbf16, #tpu.memory_space<vmem>>) attributes {dimension_semantics = [#tpu.dimension_semantics<parallel>], iteration_bounds = array<i64: 2>, scalar_prefetch = 0 : i64, scratch_operands = 0 : i64, tpu.core_type = #tpu.core_type<tc>, window_params = [{transform_indices = @transform_0, window_bounds = array<i64: 32, 32>}, {pipeline_mode = #tpu.pipeline_mode<synchronous>, transform_indices = @transform_1, window_bounds = array<i64: 32, 128>}, {pipeline_mode = #tpu.pipeline_mode<synchronous>, transform_indices = @transform_2, window_bounds = array<i64: 8, 128>}, {transform_indices = @transform_3, window_bounds = array<i64: 32, 128>}]} {
    %c0 = arith.constant 0 : index
    %c0_0 = arith.constant 0 : index
    %0 = vector.load %arg1[%c0, %c0_0] : memref<32x32xbf16, #tpu.memory_space<vmem>>, vector<32x32xbf16>
    %c0_1 = arith.constant 0 : index
    %c0_2 = arith.constant 0 : index
    %1 = vector.load %arg2[%c0_1, %c0_2] : memref<32x128xbf16, #tpu.memory_space<vmem>>, vector<32x128xbf16>
    %cst = arith.constant dense<0.000000e+00> : vector<32x128xf32>
    %2 = tpu.matmul %0, %1, %cst {dimension_numbers = #tpu.dot_dimension_numbers<[1], [0], [0], [1], [0, 0, 1, 1], [], []>} : vector<32x32xbf16>, vector<32x128xbf16>, vector<32x128xf32> -> vector<32x128xf32>
    %c0_3 = arith.constant 0 : index
    %c0_4 = arith.constant 0 : index
    %3 = vector.load %arg3[%c0_3, %c0_4] : memref<8x128xf32, #tpu.memory_space<vmem>>, vector<1x128xf32>
    %4 = vector.broadcast %3 : vector<1x128xf32> to vector<32x128xf32>
    %5 = arith.addf %2, %4 : vector<32x128xf32>
    %cst_5 = arith.constant dense<0.000000e+00> : vector<32xf32>
    %6 = vector.multi_reduction <add>, %5, %cst_5 [1] : vector<32x128xf32> to vector<32xf32>
    %7 = vector.shape_cast %6 : vector<32xf32> to vector<32x1xf32>
    %cst_6 = arith.constant 0.020833334 : f32
    %8 = vector.broadcast %cst_6 : f32 to vector<32x1xf32>
    %9 = arith.mulf %7, %8 : vector<32x1xf32>
    %10 = vector.broadcast %9 : vector<32x1xf32> to vector<32x128xf32>
    %11 = arith.subf %5, %10 : vector<32x128xf32>
    %c3 = arith.constant 3 : index
    %c0_7 = arith.constant 0 : index
    %12 = vector.load %arg3[%c3, %c0_7] : memref<8x128xf32, #tpu.memory_space<vmem>>, vector<1x128xf32>
    %13 = vector.broadcast %12 : vector<1x128xf32> to vector<32x128xf32>
    %14 = arith.mulf %11, %13 : vector<32x128xf32>
    %15 = arith.mulf %14, %14 : vector<32x128xf32>
    %cst_8 = arith.constant dense<0.000000e+00> : vector<32xf32>
    %16 = vector.multi_reduction <add>, %15, %cst_8 [1] : vector<32x128xf32> to vector<32xf32>
    %17 = vector.shape_cast %16 : vector<32xf32> to vector<32x1xf32>
    %cst_9 = arith.constant 0.020833334 : f32
    %18 = vector.broadcast %cst_9 : f32 to vector<32x1xf32>
    %19 = arith.mulf %17, %18 : vector<32x1xf32>
    %cst_10 = arith.constant 9.99999974E-6 : f32
    %20 = vector.broadcast %cst_10 : f32 to vector<32x1xf32>
    %21 = arith.addf %19, %20 : vector<32x1xf32>
    %22 = math.rsqrt %21 : vector<32x1xf32>
    %23 = vector.broadcast %22 : vector<32x1xf32> to vector<32x128xf32>
    %24 = arith.mulf %14, %23 : vector<32x128xf32>
    %c1 = arith.constant 1 : index
    %c0_11 = arith.constant 0 : index
    %25 = vector.load %arg3[%c1, %c0_11] : memref<8x128xf32, #tpu.memory_space<vmem>>, vector<1x128xf32>
    %26 = vector.broadcast %25 : vector<1x128xf32> to vector<32x128xf32>
    %27 = arith.mulf %24, %26 : vector<32x128xf32>
    %c2 = arith.constant 2 : index
    %c0_12 = arith.constant 0 : index
    %28 = vector.load %arg3[%c2, %c0_12] : memref<8x128xf32, #tpu.memory_space<vmem>>, vector<1x128xf32>
    %29 = vector.broadcast %28 : vector<1x128xf32> to vector<32x128xf32>
    %30 = arith.addf %27, %29 : vector<32x128xf32>
    %cst_13 = arith.constant 0.000000e+00 : f32
    %31 = vector.broadcast %cst_13 : f32 to vector<32x128xf32>
    %32 = arith.maximumf %30, %31 : vector<32x128xf32>
    %33 = arith.truncf %32 : vector<32x128xf32> to vector<32x128xbf16>
    %c0_14 = arith.constant 0 : index
    %c0_15 = arith.constant 0 : index
    %34 = vector.load %arg4[%c0_14, %c0_15] : memref<32x128xbf16, #tpu.memory_space<vmem>>, vector<32x128xbf16>
    tpu.vector_store %arg4[%c0_14, %c0_15], %33 {strides = array<i32>} : memref<32x128xbf16, #tpu.memory_space<vmem>>, vector<32x128xbf16>,
    return
  }
  func.func @transform_0(%arg0: i32) -> (i32, i32) {
    %c0_i32 = arith.constant 0 : i32
    %c0_i32_0 = arith.constant 0 : i32
    return %arg0, %c0_i32 : i32, i32
  }
  func.func @transform_1(%arg0: i32) -> (i32, i32) {
    %c0_i32 = arith.constant 0 : i32
    %c0_i32_0 = arith.constant 0 : i32
    %c0_i32_1 = arith.constant 0 : i32
    return %c0_i32, %c0_i32_0 : i32, i32
  }
  func.func @transform_2(%arg0: i32) -> (i32, i32) {
    %c0_i32 = arith.constant 0 : i32
    %c0_i32_0 = arith.constant 0 : i32
    %c0_i32_1 = arith.constant 0 : i32
    return %c0_i32, %c0_i32_0 : i32, i32
  }
  func.func @transform_3(%arg0: i32) -> (i32, i32) {
    %c0_i32 = arith.constant 0 : i32
    %c0_i32_0 = arith.constant 0 : i32
    return %arg0, %c0_i32 : i32, i32
  }
}

module attributes {stable_mosaic.version = 11 : i64} {
  func.func @kernel(%arg0: i32, %arg1: memref<32x32xbf16, #tpu.memory_space<vmem>>, %arg2: memref<32x128xbf16, #tpu.memory_space<vmem>>, %arg3: memref<8x128xf32, #tpu.memory_space<vmem>>, %arg4: memref<32x128xbf16, #tpu.memory_space<vmem>>) attributes {dimension_semantics = [#tpu.dimension_semantics<parallel>], iteration_bounds = array<i64: 2>, scalar_prefetch = 0 : i64, scratch_operands = 0 : i64, tpu.core_type = #tpu.core_type<tc>, window_params = [{transform_indices = @transform_0, window_bounds = array<i64: 32, 32>}, {pipeline_mode = #tpu.pipeline_mode<synchronous>, transform_indices = @transform_1, window_bounds = array<i64: 32, 128>}, {pipeline_mode = #tpu.pipeline_mode<synchronous>, transform_indices = @transform_2, window_bounds = array<i64: 8, 128>}, {transform_indices = @transform_3, window_bounds = array<i64: 32, 128>}]} {
    %c0 = arith.constant 0 : index
    %c0_0 = arith.constant 0 : index
    %0 = vector.load %arg1[%c0, %c0_0] : memref<32x32xbf16, #tpu.memory_space<vmem>>, vector<32x32xbf16>
    %c0_1 = arith.constant 0 : index
    %c0_2 = arith.constant 0 : index
    %1 = vector.load %arg2[%c0_1, %c0_2] : memref<32x128xbf16, #tpu.memory_space<vmem>>, vector<32x128xbf16>
    %cst = arith.constant dense<0.000000e+00> : vector<32x128xf32>
    %2 = tpu.matmul %0, %1, %cst {dimension_numbers = #tpu.dot_dimension_numbers<[1], [0], [0], [1], [0, 0, 1, 1], [], []>} : vector<32x32xbf16>, vector<32x128xbf16>, vector<32x128xf32> -> vector<32x128xf32>
    %c0_3 = arith.constant 0 : index
    %c0_4 = arith.constant 0 : index
    %3 = vector.load %arg3[%c0_3, %c0_4] : memref<8x128xf32, #tpu.memory_space<vmem>>, vector<1x128xf32>
    %4 = vector.broadcast %3 : vector<1x128xf32> to vector<32x128xf32>
    %5 = arith.addf %2, %4 : vector<32x128xf32>
    %cst_5 = arith.constant dense<0.000000e+00> : vector<32xf32>
    %6 = vector.multi_reduction <add>, %5, %cst_5 [1] : vector<32x128xf32> to vector<32xf32>
    %7 = vector.shape_cast %6 : vector<32xf32> to vector<32x1xf32>
    %cst_6 = arith.constant 0.020833334 : f32
    %8 = vector.broadcast %cst_6 : f32 to vector<32x1xf32>
    %9 = arith.mulf %7, %8 : vector<32x1xf32>
    %10 = vector.broadcast %9 : vector<32x1xf32> to vector<32x128xf32>
    %11 = arith.subf %5, %10 : vector<32x128xf32>
    %c3 = arith.constant 3 : index
    %c0_7 = arith.constant 0 : index
    %12 = vector.load %arg3[%c3, %c0_7] : memref<8x128xf32, #tpu.memory_space<vmem>>, vector<1x128xf32>
    %13 = vector.broadcast %12 : vector<1x128xf32> to vector<32x128xf32>
    %14 = arith.mulf %11, %13 : vector<32x128xf32>
    %15 = arith.mulf %14, %14 : vector<32x128xf32>
    %cst_8 = arith.constant dense<0.000000e+00> : vector<32xf32>
    %16 = vector.multi_reduction <add>, %15, %cst_8 [1] : vector<32x128xf32> to vector<32xf32>
    %17 = vector.shape_cast %16 : vector<32xf32> to vector<32x1xf32>
    %cst_9 = arith.constant 0.020833334 : f32
    %18 = vector.broadcast %cst_9 : f32 to vector<32x1xf32>
    %19 = arith.mulf %17, %18 : vector<32x1xf32>
    %cst_10 = arith.constant 9.99999974E-6 : f32
    %20 = vector.broadcast %cst_10 : f32 to vector<32x1xf32>
    %21 = arith.addf %19, %20 : vector<32x1xf32>
    %22 = math.rsqrt %21 : vector<32x1xf32>
    %23 = vector.broadcast %22 : vector<32x1xf32> to vector<32x128xf32>
    %24 = arith.mulf %14, %23 : vector<32x128xf32>
    %c1 = arith.constant 1 : index
    %c0_11 = arith.constant 0 : index
    %25 = vector.load %arg3[%c1, %c0_11] : memref<8x128xf32, #tpu.memory_space<vmem>>, vector<1x128xf32>
    %26 = vector.broadcast %25 : vector<1x128xf32> to vector<32x128xf32>
    %27 = arith.mulf %24, %26 : vector<32x128xf32>
    %c2 = arith.constant 2 : index
    %c0_12 = arith.constant 0 : index
    %28 = vector.load %arg3[%c2, %c0_12] : memref<8x128xf32, #tpu.memory_space<vmem>>, vector<1x128xf32>
    %29 = vector.broadcast %28 : vector<1x128xf32> to vector<32x128xf32>
    %30 = arith.addf %27, %29 : vector<32x128xf32>
    %cst_13 = arith.constant 0.000000e+00 : f32
    %31 = vector.broadcast %cst_13 : f32 to vector<32x128xf32>
    %32 = arith.maximumf %30, %31 : vector<32x128xf32>
    %33 = arith.truncf %32 : vector<32x128xf32> to vector<32x128xbf16>
    %c0_14 = arith.constant 0 : index
    %c0_15 = arith.constant 0 : index
    %34 = vector.load %arg4[%c0_14, %c0_15] : memref<32x128xbf16, #tpu.memory_space<vmem>>, vector<32x128xbf16>
    tpu.vector_store %arg4[%c0_14, %c0_15], %33 {strides = array<i32>} : memref<32x128xbf16, #tpu.memory_space<vmem>>, vector<32x128xbf16>,
    return
  }
  func.func @transform_0(%arg0: i32) -> (i32, i32) {
    %c0_i32 = arith.constant 0 : i32
    %c0_i32_0 = arith.constant 0 : i32
    return %arg0, %c0_i32 : i32, i32
  }
  func.func @transform_1(%arg0: i32) -> (i32, i32) {
    %c0_i32 = arith.constant 0 : i32
    %c0_i32_0 = arith.constant 0 : i32
    %c0_i32_1 = arith.constant 0 : i32
    return %c0_i32, %c0_i32_0 : i32, i32
  }
  func.func @transform_2(%arg0: i32) -> (i32, i32) {
    %c0_i32 = arith.constant 0 : i32
    %c0_i32_0 = arith.constant 0 : i32
    %c0_i32_1 = arith.constant 0 : i32
    return %c0_i32, %c0_i32_0 : i32, i32
  }
  func.func @transform_3(%arg0: i32) -> (i32, i32) {
    %c0_i32 = arith.constant 0 : i32
    %c0_i32_0 = arith.constant 0 : i32
    return %arg0, %c0_i32 : i32, i32
  }
}

</mosaic_0001>

<llo_original>
// kernel: tpu_custom_call.1
$region0: #{tpu_custom_call.1}
  #allocation0 [shape = 'u32[]', space=smem, size = 0x4, offset = 0x4, fixed_abs, tag = 'smem constant byte address 0x4 - core index']
  #allocation1 [shape = 'u32[72,128]{1,0:T(1,128)}', space=vmem, size = 0x9000, scoped, tag = 'internal scratch']
  %s0 = inlined_call_operand.vmem [shape: bf16[64,32], index: 0, kind: input, shape index: {}]
  %s1 = inlined_call_operand.vmem [shape: bf16[32,128], index: 1, kind: input, shape index: {}]
  %s2 = inlined_call_operand.vmem [shape: f32[8,128], index: 2, kind: input, shape index: {}]
  %s3 = inlined_call_operand.hbm [shape: bf16[64,128], index: 3, kind: output, shape index: {}]
  %s4 = sld [smem:[#allocation0]]
  $region45: #{tpu_custom_call.1} parent=0
    _
  %s6 = ssub.s32 1, %s4
  %s7 = scalar_select 0, %s6, %s4
  $region1: #{tpu_custom_call.1} parent=0
    #allocation2 [shape = 'u8[16384]{0}', space=vmem, size = 0x4000, scoped, tag = 'output window, operand 0']
    #allocation3 [shape = 's32[2]{0}', space=sflag, size = 0x8, scoped, tag = 'scoped memory for tpu_custom_call.1']
    %8 = vsyncpa [#allocation3], 0
    %s9 = scalar_lea.sflag [#allocation3], 1
    %10 = vsyncpa %s9, 0
    loop: start=0, step=1, limit=4
    $region2: #{tpu_custom_call.1} parent=1 // loop_pre_header
      _
    $region3: #{tpu_custom_call.1} parent=1 // loop_header
      %s12 = sphi 0, %s16
      %p13 = scmp.ge.s32.totalorder %s12, 4
      %s22 = sphi 0, %s24
      %s25 = sphi 0, %s22
      %s26 = sphi 0, %s25
      %s42 = sphi 0, %s26
      %s46 = sphi 0, %s46
      %s48 = sphi 0, %s46
      %s49 = sphi 0, %s48
      %s63 = sphi 0, %s49
      %s67 = sphi 0, %s67
      %s69 = sphi 0, %s67
      %s70 = sphi 0, %s69
      %s84 = sphi 0, %s70
      %s90 = sphi 0, %s92
      %s93 = sphi 0, %s90
      %s94 = sphi 0, %s93
      %s110 = sphi 0, %s94
    $region4: #{tpu_custom_call.1} parent=1 // loop_header_branch
      %15 = sbr.rel (%p13) target = $region8
    $region5: #{tpu_custom_call.1} parent=1 // loop_body
      %s17 = ssub.s32 %s12, 1
      %s18 = ssub.s32 %s12, 2
      %s19 = sadd.s32 %s12, 1
      %s20 = ssub.s32 %s12, %s19
      %p21 = scmp.eq.s32.totalorder %s20, 0
      %s23 = sadd.s32 %s22, 1
      %s24 = scalar_select %p21, %s22, %s23
      %p27 = pneg %p21
      %p28 = scmp.eq.s32.totalorder %s12, 1
      %p29 = por %p27, %p28
      %p30 = scmp.ne.s32.totalorder %s22, %s25
      %p31 = scmp.eq.s32.totalorder %s12, 0
      %p32 = por %p30, %p31
      %p33 = scmp.ne.s32.totalorder %s22, %s25
      %p34 = scmp.eq.s32.totalorder %s17, 1
      %p35 = por %p33, %p34
      %p36 = scmp.ne.s32.totalorder %s25, %s26
      %p37 = scmp.eq.s32.totalorder %s17, 0
      %p38 = por %p36, %p37
      %p39 = scmp.ne.s32.totalorder %s25, %s26
      %p40 = scmp.eq.s32.totalorder %s18, 1
      %p41 = por %p39, %p40
      %p43 = scmp.ne.s32.totalorder %s26, %s42
      %p44 = scmp.eq.s32.totalorder %s18, 0
      %p45 = por %p43, %p44
      %s47 = sadd.s32 %s46, 1
      %p50 = scmp.eq.s32.totalorder %s12, 1
      %p51 = scmp.ne.s32.totalorder %s46, %s48
      %p52 = scmp.eq.s32.totalorder %s12, 0
      %p53 = por %p51, %p52
      %p54 = scmp.ne.s32.totalorder %s46, %s48
      %p55 = scmp.eq.s32.totalorder %s17, 1
      %p56 = por %p54, %p55
      %p57 = scmp.ne.s32.totalorder %s48, %s49
      %p58 = scmp.eq.s32.totalorder %s17, 0
      %p59 = por %p57, %p58
      %p60 = scmp.ne.s32.totalorder %s48, %s49
      %p61 = scmp.eq.s32.totalorder %s18, 1
      %p62 = por %p60, %p61
      %p64 = scmp.ne.s32.totalorder %s49, %s63
      %p65 = scmp.eq.s32.totalorder %s18, 0
      %p66 = por %p64, %p65
      %s68 = sadd.s32 %s67, 1
      %p71 = scmp.eq.s32.totalorder %s12, 1
      %p72 = scmp.ne.s32.totalorder %s67, %s69
      %p73 = scmp.eq.s32.totalorder %s12, 0
      %p74 = por %p72, %p73
      %p75 = scmp.ne.s32.totalorder %s67, %s69
      %p76 = scmp.eq.s32.totalorder %s17, 1
      %p77 = por %p75, %p76
      %p78 = scmp.ne.s32.totalorder %s69, %s70
      %p79 = scmp.eq.s32.totalorder %s17, 0
      %p80 = por %p78, %p79
      %p81 = scmp.ne.s32.totalorder %s69, %s70
      %p82 = scmp.eq.s32.totalorder %s18, 1
      %p83 = por %p81, %p82
      %p85 = scmp.ne.s32.totalorder %s70, %s84
      %p86 = scmp.eq.s32.totalorder %s18, 0
      %p87 = por %p85, %p86
      %s88 = ssub.s32 %s12, %s19
      %p89 = scmp.eq.s32.totalorder %s88, 0
      %s91 = sadd.s32 %s90, 1
      %s92 = scalar_select %p89, %s90, %s91
      %p95 = pneg %p89
      %p96 = scmp.eq.s32.totalorder %s12, 1
      %p97 = por %p95, %p96
      %p98 = scmp.ne.s32.totalorder %s90, %s93
      %p99 = scmp.eq.s32.totalorder %s12, 0
      %p100 = por %p98, %p99
      %p101 = scmp.ne.s32.totalorder %s90, %s93
      %p102 = scmp.eq.s32.totalorder %s17, 1
      %p103 = por %p101, %p102
      %p104 = scmp.ne.s32.totalorder %s93, %s94
      %p105 = scmp.eq.s32.totalorder %s17, 0
      %p106 = por %p104, %p105
      %p107 = scmp.ne.s32.totalorder %s93, %s94
      %p108 = scmp.eq.s32.totalorder %s18, 1
      %p109 = por %p107, %p108
      %p111 = scmp.ne.s32.totalorder %s94, %s110
      %p112 = scmp.eq.s32.totalorder %s18, 0
      %p113 = por %p111, %p112
      %p114 = scmp.le.s32.totalorder 1, %s12
      %p115 = scmp.lt.s32.totalorder %s12, 3
      %p116 = pnand %p114, %p115
      %p117 = pneg %p116
      // Predicated region
      $region9: #{tpu_custom_call.1} parent=5 // pred_check
        _
      $region10: #{tpu_custom_call.1} parent=5 // pred_check_branch
        %119 = sbr.rel (%p116) target = $region12
      $region11: #{tpu_custom_call.1} parent=5 // pred_region
        %s120 = ssub.s32 %s12, 1
        // Predicated region
        $region13: #{tpu_custom_call.1} parent=11 // pred_check
          %p121 = pneg %p59
        $region14: #{tpu_custom_call.1} parent=11 // pred_check_branch
          %123 = sbr.rel (%p121) target = $region16
        $region15: #{tpu_custom_call.1} parent=11 // pred_region
          _
        $region16: #{tpu_custom_call.1} parent=11 // pred_fallthru
          _
        // Predicated region
        $region17: #{tpu_custom_call.1} parent=11 // pred_check
          %p124 = pneg %p80
        $region18: #{tpu_custom_call.1} parent=11 // pred_check_branch
          %126 = sbr.rel (%p124) target = $region20
        $region19: #{tpu_custom_call.1} parent=11 // pred_region
          _
        $region20: #{tpu_custom_call.1} parent=11 // pred_fallthru
          _
      $region12: #{tpu_custom_call.1} parent=5 // pred_fallthru
        _
      %p127 = scmp.lt.s32.totalorder %s12, 2
      // Predicated region
      $region21: #{tpu_custom_call.1} parent=5 // pred_check
        %p128 = pneg %p127
      $region22: #{tpu_custom_call.1} parent=5 // pred_check_branch
        %130 = sbr.rel (%p128) target = $region24
      $region23: #{tpu_custom_call.1} parent=5 // pred_region
        // Predicated region
        $region25: #{tpu_custom_call.1} parent=23 // pred_check
          %p131 = pneg %p32
        $region26: #{tpu_custom_call.1} parent=23 // pred_check_branch
          %133 = sbr.rel (%p131) target = $region28
        $region27: #{tpu_custom_call.1} parent=23 // pred_region
          %s134 = smul.u32 4, %s12
          %p135 = scmp.lt.s32.totalorder %s134, 7
          %s136 = scalar_select %p135, %s134, 7
          %s137 = smul.addr %s136, 4
          %s138 = scalar_lea.vmem %s0, %s137
          %s139 = smul.u32 4, %s12
        $region28: #{tpu_custom_call.1} parent=23 // pred_fallthru
          _
      $region24: #{tpu_custom_call.1} parent=5 // pred_fallthru
        _
      %p140 = scmp.le.s32.totalorder 1, %s12
      %p141 = scmp.lt.s32.totalorder %s12, 3
      %p142 = pnand %p140, %p141
      %p143 = pneg %p142
      // Predicated region
      $region29: #{tpu_custom_call.1} parent=5 // pred_check
        _
      $region30: #{tpu_custom_call.1} parent=5 // pred_check_branch
        %145 = sbr.rel (%p142) target = $region32
      $region31: #{tpu_custom_call.1} parent=5 // pred_region
        %s146 = ssub.s32 %s12, 1
        %s147 = smul.u32 4, %s17
        %p148 = scmp.lt.s32.totalorder %s147, 7
        %s149 = scalar_select %p148, %s147, 7
        %s150 = smul.addr %s149, 4
        %s151 = scalar_lea.vmem %s0, %s150
        %p152 = pneg %p38
        %p153 = pneg %p35
        %p154 = pneg %p59
        %p155 = pneg %p56
        %p156 = pneg %p80
        %p157 = pneg %p77
        %p158 = pneg %p106
        %p159 = pneg %p103
        %s160 = sand.u32 %s93, 1
        %s161 = scalar_lea.sflag [#allocation3], %s160
        %s162 = sand.u32 %s93, 1
        %s163 = smul.addr %s162, 16
        %s164 = scalar_lea.vmem [#allocation2], %s163
        %s165 = smul.u32 4, %s17
        %p166 = scmp.lt.s32.totalorder %s165, 7
        %s167 = scalar_select %p166, %s165, 7
        %s168 = smul.addr %s167, 4
        %s169 = scalar_lea.vmem %s0, %s168
        %s170 = smul.u32 4, %s17
        %s171 = smul.u32 4, %s17
        %v173 = vld [vmem:[%s169] sm:$0xf]
        %v174 = vld [vmem:[%s169 + $0x4] sm:$0xf]
        %v175 = vld [vmem:[%s169 + $0x8] sm:$0xf]
        %v176 = vld [vmem:[%s169 + $0xc] sm:$0xf]
        %v177 = vld [vmem:[%s1] sm:$0xf]
        %v178 = vld [vmem:[%s1 + $0x4] sm:$0xf]
        %v179 = vld [vmem:[%s1 + $0x8] sm:$0xf]
        %v180 = vld [vmem:[%s1 + $0xc] sm:$0xf]
        %v181 = vld [vmem:[%s2] sm:$0x1]
        %v182 = vperm.slane %v181, 0
        %v187 = vunpack.c.l.b16 %v173
        %v188 = vunpack.c.l.b16 %v174
        %v189 = vunpack.c.l.b16 %v175
        %v190 = vunpack.c.l.b16 %v176
        %v191 = vpack.c.b16 %v188, %v187
        %v192 = vpack.c.b16 %v190, %v189
        %v197 = vunpack.c.l.b16 %v177
        %v198 = vunpack.c.l.b16 %v178
        %v199 = vunpack.c.l.b16 %v179
        %v200 = vunpack.c.l.b16 %v180
        %v201 = vpack.c.b16 %v198, %v197
        %v202 = vpack.c.b16 %v200, %v199
        %vm205 = vcmask 261120
        %v207 = vsel %vm205, %v191, 0
        %v210 = vsel %vm205, %v192, 0
        %212 = vmatpush.bf16.msra.mxu0 0
        %213 = vmatpush.bf16.msra.mxu0 0
        %214 = vmatpush.bf16.msra.mxu0 0
        %215 = vmatpush.bf16.msra.mxu0 0
        %216 = vmatpush.bf16.msra.mxu0 0
        %217 = vmatpush.bf16.msra.mxu0 0
        %218 = vmatpush.bf16.msra.mxu0 %v202
        %219 = vmatpush.bf16.msra.mxu0 %v201
        %220 = vmatmul.bf16.gmra.mxu0 %v207
        %v221 = vpop.f32.mrf.mxu0
        %v222 = vadd.f32 %v182, %v221
        %v223 = vpop.f32.mrf.mxu0
        %v224 = vadd.f32 %v182, %v223
        %225 = vmatmul.bf16.gmra.mxu0 %v210
        %v226 = vpop.f32.mrf.mxu0
        %v227 = vadd.f32 %v182, %v226
        %v228 = vpop.f32.mrf.mxu0
        %v229 = vadd.f32 %v182, %v228
        %230 = vdwg.mxu0
        %231 = vadd.xlane.f32.xlu0 %v222
        %v232 = vpop.xlane.xlu0 %231
        %233 = vadd.xlane.f32.xlu0 %v224
        %v234 = vpop.xlane.xlu0 %233
        %235 = vadd.xlane.f32.xlu0 %v227
        %v236 = vpop.xlane.xlu0 %235
        %237 = vadd.xlane.f32.xlu0 %v229
        %v238 = vpop.xlane.xlu0 %237
        %v239 = vmul.f32 %v232, 0.020833334
        %v240 = vmul.f32 %v234, 0.020833334
        %v241 = vmul.f32 %v236, 0.020833334
        %v242 = vmul.f32 %v238, 0.020833334
        %v243 = vsub.f32 %v222, %v239
        %v244 = vsub.f32 %v224, %v240
        %v245 = vsub.f32 %v227, %v241
        %v246 = vsub.f32 %v229, %v242
        %v247 = vld [vmem:[%s2 + $0x3] sm:$0x1]
        %v248 = vperm.slane %v247, 0
        %v249 = vmul.f32 %v243, %v248
        %v250 = vmul.f32 %v244, %v248
        %v251 = vmul.f32 %v245, %v248
        %v252 = vmul.f32 %v246, %v248
        %v253 = vmul.f32 %v249, %v249
        %v254 = vmul.f32 %v250, %v250
        %v255 = vmul.f32 %v251, %v251
        %v256 = vmul.f32 %v252, %v252
        %257 = vadd.xlane.f32.xlu0 %v253
        %v258 = vpop.xlane.xlu0 %257
        %259 = vadd.xlane.f32.xlu0 %v254
        %v260 = vpop.xlane.xlu0 %259
        %261 = vadd.xlane.f32.xlu0 %v255
        %v262 = vpop.xlane.xlu0 %261
        %263 = vadd.xlane.f32.xlu0 %v256
        %v264 = vpop.xlane.xlu0 %263
        %v265 = vmul.f32 %v258, 0.020833334
        %v266 = vmul.f32 %v260, 0.020833334
        %v267 = vmul.f32 %v262, 0.020833334
        %v268 = vmul.f32 %v264, 0.020833334
        %v269 = vadd.f32 %v265, 1e-05
        %v270 = vadd.f32 %v266, 1e-05
        %v271 = vadd.f32 %v267, 1e-05
        %v272 = vadd.f32 %v268, 1e-05
        %v273 = vrsqrt.pop %v269
        %v274 = vmul.f32 %v273, %v269
        %v275 = vmul.f32 %v274, %v273
        %v276 = vmul.f32 0.5, %v275
        %v277 = vsub.f32 1.5, %v276
        %v278 = vmul.f32 %v273, %v277
        %vm279 = vweird.f32 %v269
        %vm280 = vweird.f32 %v273
        %vm281 = vmor %vm279, %vm280
        %v282 = vsel %vm281, %v273, %v278
        %v283 = vrsqrt.pop %v270
        %v284 = vmul.f32 %v283, %v270
        %v285 = vmul.f32 %v284, %v283
        %v286 = vmul.f32 0.5, %v285
        %v287 = vsub.f32 1.5, %v286
        %v288 = vmul.f32 %v283, %v287
        %vm289 = vweird.f32 %v270
        %vm290 = vweird.f32 %v283
        %vm291 = vmor %vm289, %vm290
        %v292 = vsel %vm291, %v283, %v288
        %v293 = vrsqrt.pop %v271
        %v294 = vmul.f32 %v293, %v271
        %v295 = vmul.f32 %v294, %v293
        %v296 = vmul.f32 0.5, %v295
        %v297 = vsub.f32 1.5, %v296
        %v298 = vmul.f32 %v293, %v297
        %vm299 = vweird.f32 %v271
        %vm300 = vweird.f32 %v293
        %vm301 = vmor %vm299, %vm300
        %v302 = vsel %vm301, %v293, %v298
        %v303 = vrsqrt.pop %v272
        %v304 = vmul.f32 %v303, %v272
        %v305 = vmul.f32 %v304, %v303
        %v306 = vmul.f32 0.5, %v305
        %v307 = vsub.f32 1.5, %v306
        %v308 = vmul.f32 %v303, %v307
        %vm309 = vweird.f32 %v272
        %vm310 = vweird.f32 %v303
        %vm311 = vmor %vm309, %vm310
        %v312 = vsel %vm311, %v303, %v308
        %v313 = vmul.f32 %v249, %v282
        %v314 = vmul.f32 %v250, %v292
        %v315 = vmul.f32 %v251, %v302
        %v316 = vmul.f32 %v252, %v312
        %v317 = vld [vmem:[%s2 + $0x1] sm:$0x1]
        %v318 = vperm.slane %v317, 0
        %v319 = vmul.f32 %v313, %v318
        %v320 = vmul.f32 %v314, %v318
        %v321 = vmul.f32 %v315, %v318
        %v322 = vmul.f32 %v316, %v318
        %v323 = vld [vmem:[%s2 + $0x2] sm:$0x1]
        %v324 = vperm.slane %v323, 0
        %v325 = vadd.f32 %v319, %v324
        %v326 = vadd.f32 %v320, %v324
        %v327 = vadd.f32 %v321, %v324
        %v328 = vadd.f32 %v322, %v324
        %v329 = vmax.f32 %v325, 0.0
        %v330 = vmax.f32 %v326, 0.0
        %v331 = vmax.f32 %v327, 0.0
        %v332 = vmax.f32 %v328, 0.0
        %v333 = vpack.c.bf16 %v329, %v329
        %v334 = vpack.c.bf16 %v330, %v330
        %v335 = vpack.c.bf16 %v331, %v331
        %v336 = vpack.c.bf16 %v332, %v332
        %337 = vst [vmem:[%s164] sm:$0xf] %v333
        %338 = vst [vmem:[%s164 + $0x4] sm:$0xf] %v334
        %339 = vst [vmem:[%s164 + $0x8] sm:$0xf] %v335
        %340 = vst [vmem:[%s164 + $0xc] sm:$0xf] %v336
        %s341 = sand.u32 %s93, 1
        %s342 = scalar_lea.sflag [#allocation3], %s341
        %s343 = sand.u32 %s93, 1
        %s344 = smul.addr %s343, 16
        %s345 = scalar_lea.vmem [#allocation2], %s344
        // Predicated region
        $region33: #{tpu_custom_call.1} parent=31 // pred_check
          %p346 = pneg %p103
        $region34: #{tpu_custom_call.1} parent=31 // pred_check_branch
          %348 = sbr.rel (%p346) target = $region36
        $region35: #{tpu_custom_call.1} parent=31 // pred_region
          %s349 = smul.u32 4, %s17
          %351 = vsyncadd %s342, 0
          %s352 = smul.addr %s349, 4
          %s353 = scalar_lea.hbm %s3, %s352
          %s354 = sshll.u32 %s345, 4
          %s355 = int_to_ptr.vmem [resolvable:$true] %s354
          %s356 = sshll.u32 %s353, 4
          %s357 = int_to_ptr.hbm [resolvable:$true] %s356
          %362 = dma.vmem_to_hbm [thread:$0]  %s355, 256, %s357, %s342, 64, 64, 4
        $region36: #{tpu_custom_call.1} parent=31 // pred_fallthru
          _
      $region32: #{tpu_custom_call.1} parent=5 // pred_fallthru
        _
      %p363 = scmp.le.s32.totalorder 2, %s12
      // Predicated region
      $region37: #{tpu_custom_call.1} parent=5 // pred_check
        %p364 = pneg %p363
      $region38: #{tpu_custom_call.1} parent=5 // pred_check_branch
        %366 = sbr.rel (%p364) target = $region40
      $region39: #{tpu_custom_call.1} parent=5 // pred_region
        %s367 = ssub.s32 %s12, 2
        // Predicated region
        $region41: #{tpu_custom_call.1} parent=39 // pred_check
          %p368 = pneg %p109
        $region42: #{tpu_custom_call.1} parent=39 // pred_check_branch
          %370 = sbr.rel (%p368) target = $region44
        $region43: #{tpu_custom_call.1} parent=39 // pred_region
          %s371 = sand.u32 %s94, 1
          %s372 = scalar_lea.sflag [#allocation3], %s371
          %s373 = sand.u32 %s94, 1
          %s374 = smul.addr %s373, 16
          %s375 = scalar_lea.vmem [#allocation2], %s374
          %377 = dma.done %s372, 256
        $region44: #{tpu_custom_call.1} parent=39 // pred_fallthru
          _
      $region40: #{tpu_custom_call.1} parent=5 // pred_fallthru
        _
    $region6: #{tpu_custom_call.1} parent=1 // loop_footer
      %s16 = sadd.s32 1, %s12
    $region7: #{tpu_custom_call.1} parent=1 // loop_footer_branch
      %11 = sbr.rel target = $region3
    $region8: #{tpu_custom_call.1} parent=1 // loop_exit
      _
    %378 = vsyncpa [#allocation3], 1
    %s379 = scalar_lea.sflag [#allocation3], 1
    %380 = vsyncpa %s379, 1

// kernel: tpu_custom_call.1
$region0: #{tpu_custom_call.1}
  #allocation0 [shape = 'u32[]', space=smem, size = 0x4, offset = 0x4, fixed_abs, tag = 'smem constant byte address 0x4 - core index']
  #allocation1 [shape = 'u32[72,128]{1,0:T(1,128)}', space=vmem, size = 0x9000, scoped, tag = 'internal scratch']
  %s0 = inlined_call_operand.vmem [shape: bf16[64,32], index: 0, kind: input, shape index: {}]
  %s1 = inlined_call_operand.vmem [shape: bf16[32,128], index: 1, kind: input, shape index: {}]
  %s2 = inlined_call_operand.vmem [shape: f32[8,128], index: 2, kind: input, shape index: {}]
  %s3 = inlined_call_operand.hbm [shape: bf16[64,128], index: 3, kind: output, shape index: {}]
  %s4 = sld [smem:[#allocation0]]
  $region45: #{tpu_custom_call.1} parent=0
    _
  %s6 = ssub.s32 1, %s4
  %s7 = scalar_select 0, %s6, %s4
  $region1: #{tpu_custom_call.1} parent=0
    #allocation2 [shape = 'u8[16384]{0}', space=vmem, size = 0x4000, scoped, tag = 'output window, operand 0']
    #allocation3 [shape = 's32[2]{0}', space=sflag, size = 0x8, scoped, tag = 'scoped memory for tpu_custom_call.1']
    %8 = vsyncpa [#allocation3], 0
    %s9 = scalar_lea.sflag [#allocation3], 1
    %10 = vsyncpa %s9, 0
    loop: start=0, step=1, limit=4
    $region2: #{tpu_custom_call.1} parent=1 // loop_pre_header
      _
    $region3: #{tpu_custom_call.1} parent=1 // loop_header
      %s12 = sphi 0, %s16
      %p13 = scmp.ge.s32.totalorder %s12, 4
      %s22 = sphi 0, %s24
      %s25 = sphi 0, %s22
      %s26 = sphi 0, %s25
      %s42 = sphi 0, %s26
      %s46 = sphi 0, %s46
      %s48 = sphi 0, %s46
      %s49 = sphi 0, %s48
      %s63 = sphi 0, %s49
      %s67 = sphi 0, %s67
      %s69 = sphi 0, %s67
      %s70 = sphi 0, %s69
      %s84 = sphi 0, %s70
      %s90 = sphi 0, %s92
      %s93 = sphi 0, %s90
      %s94 = sphi 0, %s93
      %s110 = sphi 0, %s94
    $region4: #{tpu_custom_call.1} parent=1 // loop_header_branch
      %15 = sbr.rel (%p13) target = $region8
    $region5: #{tpu_custom_call.1} parent=1 // loop_body
      %s17 = ssub.s32 %s12, 1
      %s18 = ssub.s32 %s12, 2
      %s19 = sadd.s32 %s12, 1
      %s20 = ssub.s32 %s12, %s19
      %p21 = scmp.eq.s32.totalorder %s20, 0
      %s23 = sadd.s32 %s22, 1
      %s24 = scalar_select %p21, %s22, %s23
      %p27 = pneg %p21
      %p28 = scmp.eq.s32.totalorder %s12, 1
      %p29 = por %p27, %p28
      %p30 = scmp.ne.s32.totalorder %s22, %s25
      %p31 = scmp.eq.s32.totalorder %s12, 0
      %p32 = por %p30, %p31
      %p33 = scmp.ne.s32.totalorder %s22, %s25
      %p34 = scmp.eq.s32.totalorder %s17, 1
      %p35 = por %p33, %p34
      %p36 = scmp.ne.s32.totalorder %s25, %s26
      %p37 = scmp.eq.s32.totalorder %s17, 0
      %p38 = por %p36, %p37
      %p39 = scmp.ne.s32.totalorder %s25, %s26
      %p40 = scmp.eq.s32.totalorder %s18, 1
      %p41 = por %p39, %p40
      %p43 = scmp.ne.s32.totalorder %s26, %s42
      %p44 = scmp.eq.s32.totalorder %s18, 0
      %p45 = por %p43, %p44
      %s47 = sadd.s32 %s46, 1
      %p50 = scmp.eq.s32.totalorder %s12, 1
      %p51 = scmp.ne.s32.totalorder %s46, %s48
      %p52 = scmp.eq.s32.totalorder %s12, 0
      %p53 = por %p51, %p52
      %p54 = scmp.ne.s32.totalorder %s46, %s48
      %p55 = scmp.eq.s32.totalorder %s17, 1
      %p56 = por %p54, %p55
      %p57 = scmp.ne.s32.totalorder %s48, %s49
      %p58 = scmp.eq.s32.totalorder %s17, 0
      %p59 = por %p57, %p58
      %p60 = scmp.ne.s32.totalorder %s48, %s49
      %p61 = scmp.eq.s32.totalorder %s18, 1
      %p62 = por %p60, %p61
      %p64 = scmp.ne.s32.totalorder %s49, %s63
      %p65 = scmp.eq.s32.totalorder %s18, 0
      %p66 = por %p64, %p65
      %s68 = sadd.s32 %s67, 1
      %p71 = scmp.eq.s32.totalorder %s12, 1
      %p72 = scmp.ne.s32.totalorder %s67, %s69
      %p73 = scmp.eq.s32.totalorder %s12, 0
      %p74 = por %p72, %p73
      %p75 = scmp.ne.s32.totalorder %s67, %s69
      %p76 = scmp.eq.s32.totalorder %s17, 1
      %p77 = por %p75, %p76
      %p78 = scmp.ne.s32.totalorder %s69, %s70
      %p79 = scmp.eq.s32.totalorder %s17, 0
      %p80 = por %p78, %p79
      %p81 = scmp.ne.s32.totalorder %s69, %s70
      %p82 = scmp.eq.s32.totalorder %s18, 1
      %p83 = por %p81, %p82
      %p85 = scmp.ne.s32.totalorder %s70, %s84
      %p86 = scmp.eq.s32.totalorder %s18, 0
      %p87 = por %p85, %p86
      %s88 = ssub.s32 %s12, %s19
      %p89 = scmp.eq.s32.totalorder %s88, 0
      %s91 = sadd.s32 %s90, 1
      %s92 = scalar_select %p89, %s90, %s91
      %p95 = pneg %p89
      %p96 = scmp.eq.s32.totalorder %s12, 1
      %p97 = por %p95, %p96
      %p98 = scmp.ne.s32.totalorder %s90, %s93
      %p99 = scmp.eq.s32.totalorder %s12, 0
      %p100 = por %p98, %p99
      %p101 = scmp.ne.s32.totalorder %s90, %s93
      %p102 = scmp.eq.s32.totalorder %s17, 1
      %p103 = por %p101, %p102
      %p104 = scmp.ne.s32.totalorder %s93, %s94
      %p105 = scmp.eq.s32.totalorder %s17, 0
      %p106 = por %p104, %p105
      %p107 = scmp.ne.s32.totalorder %s93, %s94
      %p108 = scmp.eq.s32.totalorder %s18, 1
      %p109 = por %p107, %p108
      %p111 = scmp.ne.s32.totalorder %s94, %s110
      %p112 = scmp.eq.s32.totalorder %s18, 0
      %p113 = por %p111, %p112
      %p114 = scmp.le.s32.totalorder 1, %s12
      %p115 = scmp.lt.s32.totalorder %s12, 3
      %p116 = pnand %p114, %p115
      %p117 = pneg %p116
      // Predicated region
      $region9: #{tpu_custom_call.1} parent=5 // pred_check
        _
      $region10: #{tpu_custom_call.1} parent=5 // pred_check_branch
        %119 = sbr.rel (%p116) target = $region12
      $region11: #{tpu_custom_call.1} parent=5 // pred_region
        %s120 = ssub.s32 %s12, 1
        // Predicated region
        $region13: #{tpu_custom_call.1} parent=11 // pred_check
          %p121 = pneg %p59
        $region14: #{tpu_custom_call.1} parent=11 // pred_check_branch
          %123 = sbr.rel (%p121) target = $region16
        $region15: #{tpu_custom_call.1} parent=11 // pred_region
          _
        $region16: #{tpu_custom_call.1} parent=11 // pred_fallthru
          _
        // Predicated region
        $region17: #{tpu_custom_call.1} parent=11 // pred_check
          %p124 = pneg %p80
        $region18: #{tpu_custom_call.1} parent=11 // pred_check_branch
          %126 = sbr.rel (%p124) target = $region20
        $region19: #{tpu_custom_call.1} parent=11 // pred_region
          _
        $region20: #{tpu_custom_call.1} parent=11 // pred_fallthru
          _
      $region12: #{tpu_custom_call.1} parent=5 // pred_fallthru
        _
      %p127 = scmp.lt.s32.totalorder %s12, 2
      // Predicated region
      $region21: #{tpu_custom_call.1} parent=5 // pred_check
        %p128 = pneg %p127
      $region22: #{tpu_custom_call.1} parent=5 // pred_check_branch
        %130 = sbr.rel (%p128) target = $region24
      $region23: #{tpu_custom_call.1} parent=5 // pred_region
        // Predicated region
        $region25: #{tpu_custom_call.1} parent=23 // pred_check
          %p131 = pneg %p32
        $region26: #{tpu_custom_call.1} parent=23 // pred_check_branch
          %133 = sbr.rel (%p131) target = $region28
        $region27: #{tpu_custom_call.1} parent=23 // pred_region
          %s134 = smul.u32 4, %s12
          %p135 = scmp.lt.s32.totalorder %s134, 7
          %s136 = scalar_select %p135, %s134, 7
          %s137 = smul.addr %s136, 4
          %s138 = scalar_lea.vmem %s0, %s137
          %s139 = smul.u32 4, %s12
        $region28: #{tpu_custom_call.1} parent=23 // pred_fallthru
          _
      $region24: #{tpu_custom_call.1} parent=5 // pred_fallthru
        _
      %p140 = scmp.le.s32.totalorder 1, %s12
      %p141 = scmp.lt.s32.totalorder %s12, 3
      %p142 = pnand %p140, %p141
      %p143 = pneg %p142
      // Predicated region
      $region29: #{tpu_custom_call.1} parent=5 // pred_check
        _
      $region30: #{tpu_custom_call.1} parent=5 // pred_check_branch
        %145 = sbr.rel (%p142) target = $region32
      $region31: #{tpu_custom_call.1} parent=5 // pred_region
        %s146 = ssub.s32 %s12, 1
        %s147 = smul.u32 4, %s17
        %p148 = scmp.lt.s32.totalorder %s147, 7
        %s149 = scalar_select %p148, %s147, 7
        %s150 = smul.addr %s149, 4
        %s151 = scalar_lea.vmem %s0, %s150
        %p152 = pneg %p38
        %p153 = pneg %p35
        %p154 = pneg %p59
        %p155 = pneg %p56
        %p156 = pneg %p80
        %p157 = pneg %p77
        %p158 = pneg %p106
        %p159 = pneg %p103
        %s160 = sand.u32 %s93, 1
        %s161 = scalar_lea.sflag [#allocation3], %s160
        %s162 = sand.u32 %s93, 1
        %s163 = smul.addr %s162, 16
        %s164 = scalar_lea.vmem [#allocation2], %s163
        %s165 = smul.u32 4, %s17
        %p166 = scmp.lt.s32.totalorder %s165, 7
        %s167 = scalar_select %p166, %s165, 7
        %s168 = smul.addr %s167, 4
        %s169 = scalar_lea.vmem %s0, %s168
        %s170 = smul.u32 4, %s17
        %s171 = smul.u32 4, %s17
        %v173 = vld [vmem:[%s169] sm:$0xf]
        %v174 = vld [vmem:[%s169 + $0x4] sm:$0xf]
        %v175 = vld [vmem:[%s169 + $0x8] sm:$0xf]
        %v176 = vld [vmem:[%s169 + $0xc] sm:$0xf]
        %v177 = vld [vmem:[%s1] sm:$0xf]
        %v178 = vld [vmem:[%s1 + $0x4] sm:$0xf]
        %v179 = vld [vmem:[%s1 + $0x8] sm:$0xf]
        %v180 = vld [vmem:[%s1 + $0xc] sm:$0xf]
        %v181 = vld [vmem:[%s2] sm:$0x1]
        %v182 = vperm.slane %v181, 0
        %v187 = vunpack.c.l.b16 %v173
        %v188 = vunpack.c.l.b16 %v174
        %v189 = vunpack.c.l.b16 %v175
        %v190 = vunpack.c.l.b16 %v176
        %v191 = vpack.c.b16 %v188, %v187
        %v192 = vpack.c.b16 %v190, %v189
        %v197 = vunpack.c.l.b16 %v177
        %v198 = vunpack.c.l.b16 %v178
        %v199 = vunpack.c.l.b16 %v179
        %v200 = vunpack.c.l.b16 %v180
        %v201 = vpack.c.b16 %v198, %v197
        %v202 = vpack.c.b16 %v200, %v199
        %vm205 = vcmask 261120
        %v207 = vsel %vm205, %v191, 0
        %v210 = vsel %vm205, %v192, 0
        %212 = vmatpush.bf16.msra.mxu0 0
        %213 = vmatpush.bf16.msra.mxu0 0
        %214 = vmatpush.bf16.msra.mxu0 0
        %215 = vmatpush.bf16.msra.mxu0 0
        %216 = vmatpush.bf16.msra.mxu0 0
        %217 = vmatpush.bf16.msra.mxu0 0
        %218 = vmatpush.bf16.msra.mxu0 %v202
        %219 = vmatpush.bf16.msra.mxu0 %v201
        %220 = vmatmul.bf16.gmra.mxu0 %v207
        %v221 = vpop.f32.mrf.mxu0
        %v222 = vadd.f32 %v182, %v221
        %v223 = vpop.f32.mrf.mxu0
        %v224 = vadd.f32 %v182, %v223
        %225 = vmatmul.bf16.gmra.mxu0 %v210
        %v226 = vpop.f32.mrf.mxu0
        %v227 = vadd.f32 %v182, %v226
        %v228 = vpop.f32.mrf.mxu0
        %v229 = vadd.f32 %v182, %v228
        %230 = vdwg.mxu0
        %231 = vadd.xlane.f32.xlu0 %v222
        %v232 = vpop.xlane.xlu0 %231
        %233 = vadd.xlane.f32.xlu0 %v224
        %v234 = vpop.xlane.xlu0 %233
        %235 = vadd.xlane.f32.xlu0 %v227
        %v236 = vpop.xlane.xlu0 %235
        %237 = vadd.xlane.f32.xlu0 %v229
        %v238 = vpop.xlane.xlu0 %237
        %v239 = vmul.f32 %v232, 0.020833334
        %v240 = vmul.f32 %v234, 0.020833334
        %v241 = vmul.f32 %v236, 0.020833334
        %v242 = vmul.f32 %v238, 0.020833334
        %v243 = vsub.f32 %v222, %v239
        %v244 = vsub.f32 %v224, %v240
        %v245 = vsub.f32 %v227, %v241
        %v246 = vsub.f32 %v229, %v242
        %v247 = vld [vmem:[%s2 + $0x3] sm:$0x1]
        %v248 = vperm.slane %v247, 0
        %v249 = vmul.f32 %v243, %v248
        %v250 = vmul.f32 %v244, %v248
        %v251 = vmul.f32 %v245, %v248
        %v252 = vmul.f32 %v246, %v248
        %v253 = vmul.f32 %v249, %v249
        %v254 = vmul.f32 %v250, %v250
        %v255 = vmul.f32 %v251, %v251
        %v256 = vmul.f32 %v252, %v252
        %257 = vadd.xlane.f32.xlu0 %v253
        %v258 = vpop.xlane.xlu0 %257
        %259 = vadd.xlane.f32.xlu0 %v254
        %v260 = vpop.xlane.xlu0 %259
        %261 = vadd.xlane.f32.xlu0 %v255
        %v262 = vpop.xlane.xlu0 %261
        %263 = vadd.xlane.f32.xlu0 %v256
        %v264 = vpop.xlane.xlu0 %263
        %v265 = vmul.f32 %v258, 0.020833334
        %v266 = vmul.f32 %v260, 0.020833334
        %v267 = vmul.f32 %v262, 0.020833334
        %v268 = vmul.f32 %v264, 0.020833334
        %v269 = vadd.f32 %v265, 1e-05
        %v270 = vadd.f32 %v266, 1e-05
        %v271 = vadd.f32 %v267, 1e-05
        %v272 = vadd.f32 %v268, 1e-05
        %v273 = vrsqrt.pop %v269
        %v274 = vmul.f32 %v273, %v269
        %v275 = vmul.f32 %v274, %v273
        %v276 = vmul.f32 0.5, %v275
        %v277 = vsub.f32 1.5, %v276
        %v278 = vmul.f32 %v273, %v277
        %vm279 = vweird.f32 %v269
        %vm280 = vweird.f32 %v273
        %vm281 = vmor %vm279, %vm280
        %v282 = vsel %vm281, %v273, %v278
        %v283 = vrsqrt.pop %v270
        %v284 = vmul.f32 %v283, %v270
        %v285 = vmul.f32 %v284, %v283
        %v286 = vmul.f32 0.5, %v285
        %v287 = vsub.f32 1.5, %v286
        %v288 = vmul.f32 %v283, %v287
        %vm289 = vweird.f32 %v270
        %vm290 = vweird.f32 %v283
        %vm291 = vmor %vm289, %vm290
        %v292 = vsel %vm291, %v283, %v288
        %v293 = vrsqrt.pop %v271
        %v294 = vmul.f32 %v293, %v271
        %v295 = vmul.f32 %v294, %v293
        %v296 = vmul.f32 0.5, %v295
        %v297 = vsub.f32 1.5, %v296
        %v298 = vmul.f32 %v293, %v297
        %vm299 = vweird.f32 %v271
        %vm300 = vweird.f32 %v293
        %vm301 = vmor %vm299, %vm300
        %v302 = vsel %vm301, %v293, %v298
        %v303 = vrsqrt.pop %v272
        %v304 = vmul.f32 %v303, %v272
        %v305 = vmul.f32 %v304, %v303
        %v306 = vmul.f32 0.5, %v305
        %v307 = vsub.f32 1.5, %v306
        %v308 = vmul.f32 %v303, %v307
        %vm309 = vweird.f32 %v272
        %vm310 = vweird.f32 %v303
        %vm311 = vmor %vm309, %vm310
        %v312 = vsel %vm311, %v303, %v308
        %v313 = vmul.f32 %v249, %v282
        %v314 = vmul.f32 %v250, %v292
        %v315 = vmul.f32 %v251, %v302
        %v316 = vmul.f32 %v252, %v312
        %v317 = vld [vmem:[%s2 + $0x1] sm:$0x1]
        %v318 = vperm.slane %v317, 0
        %v319 = vmul.f32 %v313, %v318
        %v320 = vmul.f32 %v314, %v318
        %v321 = vmul.f32 %v315, %v318
        %v322 = vmul.f32 %v316, %v318
        %v323 = vld [vmem:[%s2 + $0x2] sm:$0x1]
        %v324 = vperm.slane %v323, 0
        %v325 = vadd.f32 %v319, %v324
        %v326 = vadd.f32 %v320, %v324
        %v327 = vadd.f32 %v321, %v324
        %v328 = vadd.f32 %v322, %v324
        %v329 = vmax.f32 %v325, 0.0
        %v330 = vmax.f32 %v326, 0.0
        %v331 = vmax.f32 %v327, 0.0
        %v332 = vmax.f32 %v328, 0.0
        %v333 = vpack.c.bf16 %v329, %v329
        %v334 = vpack.c.bf16 %v330, %v330
        %v335 = vpack.c.bf16 %v331, %v331
        %v336 = vpack.c.bf16 %v332, %v332
        %337 = vst [vmem:[%s164] sm:$0xf] %v333
        %338 = vst [vmem:[%s164 + $0x4] sm:$0xf] %v334
        %339 = vst [vmem:[%s164 + $0x8] sm:$0xf] %v335
        %340 = vst [vmem:[%s164 + $0xc] sm:$0xf] %v336
        %s341 = sand.u32 %s93, 1
        %s342 = scalar_lea.sflag [#allocation3], %s341
        %s343 = sand.u32 %s93, 1
        %s344 = smul.addr %s343, 16
        %s345 = scalar_lea.vmem [#allocation2], %s344
        // Predicated region
        $region33: #{tpu_custom_call.1} parent=31 // pred_check
          %p346 = pneg %p103
        $region34: #{tpu_custom_call.1} parent=31 // pred_check_branch
          %348 = sbr.rel (%p346) target = $region36
        $region35: #{tpu_custom_call.1} parent=31 // pred_region
          %s349 = smul.u32 4, %s17
          %351 = vsyncadd %s342, 0
          %s352 = smul.addr %s349, 4
          %s353 = scalar_lea.hbm %s3, %s352
          %s354 = sshll.u32 %s345, 4
          %s355 = int_to_ptr.vmem [resolvable:$true] %s354
          %s356 = sshll.u32 %s353, 4
          %s357 = int_to_ptr.hbm [resolvable:$true] %s356
          %362 = dma.vmem_to_hbm [thread:$0]  %s355, 256, %s357, %s342, 64, 64, 4
        $region36: #{tpu_custom_call.1} parent=31 // pred_fallthru
          _
      $region32: #{tpu_custom_call.1} parent=5 // pred_fallthru
        _
      %p363 = scmp.le.s32.totalorder 2, %s12
      // Predicated region
      $region37: #{tpu_custom_call.1} parent=5 // pred_check
        %p364 = pneg %p363
      $region38: #{tpu_custom_call.1} parent=5 // pred_check_branch
        %366 = sbr.rel (%p364) target = $region40
      $region39: #{tpu_custom_call.1} parent=5 // pred_region
        %s367 = ssub.s32 %s12, 2
        // Predicated region
        $region41: #{tpu_custom_call.1} parent=39 // pred_check
          %p368 = pneg %p109
        $region42: #{tpu_custom_call.1} parent=39 // pred_check_branch
          %370 = sbr.rel (%p368) target = $region44
        $region43: #{tpu_custom_call.1} parent=39 // pred_region
          %s371 = sand.u32 %s94, 1
          %s372 = scalar_lea.sflag [#allocation3], %s371
          %s373 = sand.u32 %s94, 1
          %s374 = smul.addr %s373, 16
          %s375 = scalar_lea.vmem [#allocation2], %s374
          %377 = dma.done %s372, 256
        $region44: #{tpu_custom_call.1} parent=39 // pred_fallthru
          _
      $region40: #{tpu_custom_call.1} parent=5 // pred_fallthru
        _
    $region6: #{tpu_custom_call.1} parent=1 // loop_footer
      %s16 = sadd.s32 1, %s12
    $region7: #{tpu_custom_call.1} parent=1 // loop_footer_branch
      %11 = sbr.rel target = $region3
    $region8: #{tpu_custom_call.1} parent=1 // loop_exit
      _
    %378 = vsyncpa [#allocation3], 1
    %s379 = scalar_lea.sflag [#allocation3], 1
    %380 = vsyncpa %s379, 1

</llo_original>
